<compile_context>
chip_gen: v5e
topology: v5e:2x2
jax: 0.10.0
libtpu: 0.0.40
codegen_flags: <defaults>
</compile_context>

<pallas_src>
import math

import jax
import jax.numpy as jnp
from jax.experimental import pallas as pl
from jax.experimental.pallas import tpu as pltpu

HIDDEN = 39                  # SelfAttention hidden size (fixed to 39 in the reference module)
HEADS = 3                    # number of attention heads
HEAD_DIM = HIDDEN // HEADS   # 13
DH_PAD = 16                  # head dim padded to 16 lanes per flatten slot (alignment)
QK_SEC = 128                 # lane-aligned section width for the Q / K projection outputs
BN_EPS = 1e-5                # nn.BatchNorm1d default eps


def _row_mod(r, d, bound):
    """Elementwise r % d for int32 iota values 0 <= r < bound, via a short static
    where-chain (avoids vector integer division, which may not lower on the VPU)."""
    for _ in range((bound - 1) // d):
        r = jnp.where(r >= d, r - d, r)
    return r


# ----------------------------- Fused forward kernel -----------------------------

def _make_fused_kernel(batch, seq, n_extra, out_dim):
    heads, dh, dhp = HEADS, HEAD_DIM, DH_PAD
    rows = batch * heads * seq           # packed (b, h, s) sublane rows
    grp = heads * seq                    # rows per batch / flatten slots per batch
    vt_w = grp * dhp                     # tiled-V width == packed flatten width
    scale = 1.0 / math.sqrt(dh)

    def kernel(x_ref, wqkv_ref, w1_ref, wmlp_ref, bias_ref, o_ref):
        f32, bf16 = jnp.float32, jnp.bfloat16

        # ---- fused Q/K/V projection: ONE (rows, H*(F+1)) @ (H*(F+1), 2*128+vt_w) bf16
        # MXU matmul. The block-diagonal-over-heads input means the result is already in
        # packed (b, h, s) row order; biases ride in via the ones column of x_exp.
        qkv = jnp.dot(x_ref[...], wqkv_ref[...], preferred_element_type=f32)
        q = qkv[:, 0:QK_SEC]                       # own-head q in lanes 0..12, rest zero
        k = qkv[:, QK_SEC:2 * QK_SEC]              # own-head k in lanes 0..12, rest zero
        v_tiled = qkv[:, 2 * QK_SEC:2 * QK_SEC + vt_w]   # own-head v replicated per slot

        # ---- attention scores for ALL (batch, head) groups in ONE matmul. Rows of a
        # group share the same 13 nonzero lanes, so cross-head lane products only appear
        # in entries that the block-diagonal mask kills anyway. The reference's all-ones
        # attention_mask adds exactly 0 and is elided.
        s = jax.lax.dot_general(q.astype(bf16), k.astype(bf16),
                                (((1,), (1,)), ((), ())),
                                preferred_element_type=f32) * scale         # (rows, rows)
        ri = jax.lax.broadcasted_iota(jnp.int32, (rows, 1), 0)
        ci = jax.lax.broadcasted_iota(jnp.int32, (rows, rows), 1)
        blk_start = ri - _row_mod(ri, seq, rows)          # first row of this (b, h) block
        s = s + jnp.where((ci >= blk_start) & (ci < blk_start + seq), 0.0, -1e30)
        s = s - jnp.max(s, axis=-1, keepdims=True)
        p = jnp.exp(s)
        p = p * pl.reciprocal(jnp.sum(p, axis=-1, keepdims=True), approx=True)
        # TODO(synk): nn.Dropout(0.2) on attention_probs is train-mode stochastic; identity in eval.

        # ---- context + flatten. V was pre-tiled over the grp flatten slots, so one
        # matmul, one constant keep-mask and one 0/1 batch-selector matmul reproduce
        # permute(0,2,1,3)+flatten entirely on the MXU (no in-kernel reshape/transpose).
        ctx_t = jnp.dot(p.astype(bf16), v_tiled.astype(bf16),
                        preferred_element_type=f32)                          # (rows, vt_w)
        j_r = _row_mod(ri, grp, rows)                     # flatten slot (h*seq + s) of row
        cj = jax.lax.broadcasted_iota(jnp.int32, (rows, vt_w), 1)
        keep = (cj >= j_r * dhp) & (cj < j_r * dhp + dhp)
        ctx_bd = jnp.where(keep, ctx_t, 0.0)

        bi = jax.lax.broadcasted_iota(jnp.int32, (batch, rows), 0)
        ei = jax.lax.broadcasted_iota(jnp.int32, (batch, rows), 1)
        esel = ((ei >= bi * grp) & (ei < bi * grp + grp)).astype(bf16)       # batch selector
        ctx_flat = jnp.dot(esel, ctx_bd.astype(bf16),
                           preferred_element_type=f32)                       # (batch, vt_w)

        # ---- MLP: BatchNorm folded into the Linears at prep time; Dropout = identity.
        h = jnp.dot(ctx_flat.astype(bf16), w1_ref[...], preferred_element_type=f32)
        h = jnp.maximum(h + bias_ref[0:1, :], 0.0)
        for i in range(n_extra):
            h = jnp.dot(h.astype(bf16), wmlp_ref[i], preferred_element_type=f32)
            h = jnp.maximum(h + bias_ref[i + 1:i + 2, :], 0.0)
        out = jnp.dot(h.astype(bf16), wmlp_ref[n_extra], preferred_element_type=f32)
        out = out + bias_ref[n_extra + 1:n_extra + 2, :]
        o_ref[...] = out[:, :out_dim]

    return kernel


# ----------------------------- Parameter prep & wrapper -----------------------------

def _fold_bn(w, b, gamma, beta, mean, var):
    """Fold inference BatchNorm1d into the preceding Linear (identical numerics)."""
    scale = gamma * jax.lax.rsqrt(var + BN_EPS)
    return w * scale[None, :], (b - mean) * scale + beta


def classifier_forward(x, params):
    """x: (B, S, 39). Linear weights stored (in, out); biases / BN stats are 1-D."""
    B, S, F = x.shape
    assert F == HIDDEN
    H, Dh, Dhp = HEADS, HEAD_DIM, DH_PAD
    grp = H * S
    vt_w = grp * Dhp

    # --- fused QKV weight: per-head row blocks of (F weights + 1 bias row); columns are
    # [Q pad128 | K pad128 | V tiled over the grp flatten slots (16-lane blocks)].
    wq, bq, wk, bk, wv, bv = params["attn"]
    wq_a = jnp.concatenate([wq, bq[None, :]], axis=0)          # (F+1, F)
    wk_a = jnp.concatenate([wk, bk[None, :]], axis=0)
    wv_a = jnp.concatenate([wv, bv[None, :]], axis=0)
    head_rows = []
    for h in range(H):
        sl = slice(h * Dh, (h + 1) * Dh)
        q_sec = jnp.pad(wq_a[:, sl], ((0, 0), (0, QK_SEC - Dh)))
        k_sec = jnp.pad(wk_a[:, sl], ((0, 0), (0, QK_SEC - Dh)))
        v_blk = jnp.pad(wv_a[:, sl], ((0, 0), (0, Dhp - Dh)))          # (F+1, 16)
        v_sec = jnp.tile(v_blk, (1, grp))                              # (F+1, vt_w)
        head_rows.append(jnp.concatenate([q_sec, k_sec, v_sec], axis=1))
    w_qkv = jnp.concatenate(head_rows, axis=0).astype(jnp.bfloat16)    # (H*(F+1), 256+vt_w)

    # --- MLP: fold BN; permute W1 rows from PyTorch flatten order s*F + h*Dh + d to the
    # packed order h*(S*Dhp) + s*Dhp + d (zero rows in the 3 padding lanes per slot).
    folded = [_fold_bn(*blk) for blk in params["blocks"]]
    w1, b1 = folded[0]
    hidden = w1.shape[1]
    out_dim = params["w_out"].shape[1]
    slab_w = max(hidden, out_dim)
    w1p = jnp.transpose(w1.reshape(S, H, Dh, hidden), (1, 0, 2, 3))
    w1p = jnp.pad(w1p, ((0, 0), (0, 0), (0, Dhp - Dh), (0, slab_w - hidden)))
    w1p = w1p.reshape(vt_w, slab_w).astype(jnp.bfloat16)

    mlp_ws, mlp_bs = [], [jnp.pad(b1, (0, slab_w - hidden))]
    for w, b in folded[1:]:
        mlp_ws.append(jnp.pad(w, ((0, slab_w - w.shape[0]), (0, slab_w - w.shape[1]))))
        mlp_bs.append(jnp.pad(b, (0, slab_w - b.shape[0])))
    mlp_ws.append(jnp.pad(params["w_out"], ((0, slab_w - hidden), (0, slab_w - out_dim))))
    mlp_bs.append(jnp.pad(params["b_out"], (0, slab_w - out_dim)))
    w_mlp = jnp.stack(mlp_ws, axis=0).astype(jnp.bfloat16)     # (n_extra+1, slab_w, slab_w)
    biases = jnp.stack(mlp_bs, axis=0).astype(jnp.float32)     # (n_extra+2, slab_w)

    # --- input: append a ones column (folds QKV biases) and expand block-diagonally over
    # heads so the projection lands directly in packed (b, h, s) sublane order.
    x_aug = jnp.concatenate([x, jnp.ones((B, S, 1), x.dtype)], axis=-1)     # (B, S, F+1)
    eye = jnp.eye(H, dtype=x.dtype)
    x_exp = eye[None, :, None, :, None] * x_aug[:, None, :, None, :]        # (B,H,S,H,F+1)
    x_exp = x_exp.reshape(B * H * S, H * (F + 1)).astype(jnp.bfloat16)

    n_extra = len(folded) - 1
    return pl.pallas_call(
        _make_fused_kernel(B, S, n_extra, out_dim),
        in_specs=[pl.BlockSpec(memory_space=pltpu.MemorySpace.VMEM)] * 5,
        out_specs=pl.BlockSpec(memory_space=pltpu.MemorySpace.VMEM),
        out_shape=jax.ShapeDtypeStruct((B, out_dim), jnp.float32),
    )(x_exp, w_qkv, w1p, w_mlp, biases)


# ----------------------------- Pure-JAX f32 reference (PyTorch eval semantics) -----------------------------

def reference_forward(x, params):
    wq, bq, wk, bk, wv, bv = params["attn"]
    B, S, F = x.shape
    H, Dh = HEADS, HEAD_DIM
    q = x @ wq + bq
    k = x @ wk + bk
    v = x @ wv + bv
    split = lambda t: t.reshape(B, S, H, Dh).transpose(0, 2, 1, 3)   # (B, H, S, Dh)
    qh, kh, vh = split(q), split(k), split(v)
    scores = jnp.einsum("bhsd,bhtd->bhst", qh, kh) / math.sqrt(Dh)
    probs = jax.nn.softmax(scores, axis=-1)
    ctx = jnp.einsum("bhst,bhtd->bhsd", probs, vh)
    h = ctx.transpose(0, 2, 1, 3).reshape(B, S * F)
    for (w, b, gamma, beta, mean, var) in params["blocks"]:
        h = h @ w + b
        h = (h - mean) / jnp.sqrt(var + BN_EPS) * gamma + beta
        h = jnp.maximum(h, 0.0)
    return h @ params["w_out"] + params["b_out"]


# ----------------------------- Init & main -----------------------------

def init_linear(key, fan_in, fan_out):
    """Deterministic init (PyTorch-style uniform bounds); weight stored as (in, out)."""
    kw, kb = jax.random.split(key)
    bound = 1.0 / math.sqrt(fan_in)
    w = jax.random.uniform(kw, (fan_in, fan_out), jnp.float32, -bound, bound)
    b = jax.random.uniform(kb, (fan_out,), jnp.float32, -bound, bound)
    return w, b


if __name__ == "__main__":
    B, S = 2, 8
    F = HIDDEN                 # 39
    input_dim = S * F          # 312 (Classifier input_dim must equal S * 39)
    hidden_dim = 64
    output_dim = 41
    hidden_layers = 1

    key = jax.random.PRNGKey(0)
    keys = jax.random.split(key, 8)

    x = jax.random.normal(keys[0], (B, S, F), jnp.float32)

    # SelfAttention(39, 3, 0.2) parameters
    wq, bq = init_linear(keys[1], F, F)
    wk, bk = init_linear(keys[2], F, F)
    wv, bv = init_linear(keys[3], F, F)

    # BasicBlock(input_dim, hidden_dim) + hidden_layers * BasicBlock(hidden_dim, hidden_dim)
    blocks = []
    dims = [input_dim] + [hidden_dim] * (1 + hidden_layers)
    for li in range(1 + hidden_layers):
        w, b = init_linear(keys[4 + li], dims[li], dims[li + 1])
        n = dims[li + 1]
        gamma = jnp.ones((n,), jnp.float32)
        beta = jnp.zeros((n,), jnp.float32)
        mean = jnp.zeros((n,), jnp.float32)      # BatchNorm1d running_mean default
        var = jnp.ones((n,), jnp.float32)        # BatchNorm1d running_var default
        blocks.append((w, b, gamma, beta, mean, var))

    # final nn.Linear(hidden_dim, output_dim)
    w_out, b_out = init_linear(keys[6], hidden_dim, output_dim)

    params = {
        "attn": (wq, bq, wk, bk, wv, bv),
        "blocks": blocks,
        "w_out": w_out,
        "b_out": b_out,
    }

    logits = jax.jit(classifier_forward)(x, params)
    logits = jax.block_until_ready(logits)
    assert logits.shape == (B, output_dim), logits.shape
    assert bool(jnp.all(jnp.isfinite(logits)))

    ref = reference_forward(x, params)
    # bf16 MXU operands (f32 accumulation) -> slightly looser tolerance than pure f32.
    assert bool(jnp.allclose(logits, ref, atol=2e-2, rtol=2e-2)), \
        float(jnp.max(jnp.abs(logits - ref)))

    print("KERNEL_OK")
</pallas_src>

<mosaic_0001>
module attributes {stable_mosaic.version = 11 : i64} {
  func.func @kernel(%arg0: memref<48x120xbf16, #tpu.memory_space<vmem>>, %arg1: memref<120x640xbf16, #tpu.memory_space<vmem>>, %arg2: memref<384x64xbf16, #tpu.memory_space<vmem>>, %arg3: memref<2x64x64xbf16, #tpu.memory_space<vmem>>, %arg4: memref<3x64xf32, #tpu.memory_space<vmem>>, %arg5: memref<2x41xf32, #tpu.memory_space<vmem>>) attributes {dimension_semantics = [], scalar_prefetch = 0 : i64, scratch_operands = 0 : i64, tpu.core_type = #tpu.core_type<tc>} {
    %c0 = arith.constant 0 : index
    %c0_0 = arith.constant 0 : index
    %0 = vector.load %arg0[%c0, %c0_0] : memref<48x120xbf16, #tpu.memory_space<vmem>>, vector<48x120xbf16>
    %c0_1 = arith.constant 0 : index
    %c0_2 = arith.constant 0 : index
    %1 = vector.load %arg1[%c0_1, %c0_2] : memref<120x640xbf16, #tpu.memory_space<vmem>>, vector<120x640xbf16>
    %cst = arith.constant dense<0.000000e+00> : vector<48x640xf32>
    %2 = tpu.matmul %0, %1, %cst {dimension_numbers = #tpu.dot_dimension_numbers<[1], [0], [0], [1], [0, 0, 1, 1], [], []>} : vector<48x120xbf16>, vector<120x640xbf16>, vector<48x640xf32> -> vector<48x640xf32>
    %3 = vector.extract_strided_slice %2 {offsets = [0, 0], sizes = [48, 128], strides = [1, 1]} : vector<48x640xf32> to vector<48x128xf32>
    %4 = vector.extract_strided_slice %2 {offsets = [0, 128], sizes = [48, 128], strides = [1, 1]} : vector<48x640xf32> to vector<48x128xf32>
    %5 = vector.extract_strided_slice %2 {offsets = [0, 256], sizes = [48, 384], strides = [1, 1]} : vector<48x640xf32> to vector<48x384xf32>
    %6 = arith.truncf %3 : vector<48x128xf32> to vector<48x128xbf16>
    %7 = arith.truncf %4 : vector<48x128xf32> to vector<48x128xbf16>
    %cst_3 = arith.constant dense<0.000000e+00> : vector<48x48xf32>
    %8 = tpu.matmul %6, %7, %cst_3 {dimension_numbers = #tpu.dot_dimension_numbers<[1], [1], [0], [0], [0, 0, 1, 0], [], []>} : vector<48x128xbf16>, vector<48x128xbf16>, vector<48x48xf32> -> vector<48x48xf32>
    %cst_4 = arith.constant 0.277350098 : f32
    %9 = vector.broadcast %cst_4 : f32 to vector<48x48xf32>
    %10 = arith.mulf %8, %9 : vector<48x48xf32>
    %11 = tpu.iota {dimensions = array<i32: 0>} : vector<48x1xi32>
    %12 = tpu.iota {dimensions = array<i32: 1>} : vector<48x48xi32>
    %c8_i32 = arith.constant 8 : i32
    %13 = vector.broadcast %c8_i32 : i32 to vector<48x1xi32>
    %14 = arith.cmpi sge, %11, %13 : vector<48x1xi32>
    %c8_i32_5 = arith.constant 8 : i32
    %15 = vector.broadcast %c8_i32_5 : i32 to vector<48x1xi32>
    %16 = arith.subi %11, %15 : vector<48x1xi32>
    %17 = arith.select %14, %16, %11 : vector<48x1xi1>, vector<48x1xi32>
    %c8_i32_6 = arith.constant 8 : i32
    %18 = vector.broadcast %c8_i32_6 : i32 to vector<48x1xi32>
    %19 = arith.cmpi sge, %17, %18 : vector<48x1xi32>
    %c8_i32_7 = arith.constant 8 : i32
    %20 = vector.broadcast %c8_i32_7 : i32 to vector<48x1xi32>
    %21 = arith.subi %17, %20 : vector<48x1xi32>
    %22 = arith.select %19, %21, %17 : vector<48x1xi1>, vector<48x1xi32>
    %c8_i32_8 = arith.constant 8 : i32
    %23 = vector.broadcast %c8_i32_8 : i32 to vector<48x1xi32>
    %24 = arith.cmpi sge, %22, %23 : vector<48x1xi32>
    %c8_i32_9 = arith.constant 8 : i32
    %25 = vector.broadcast %c8_i32_9 : i32 to vector<48x1xi32>
    %26 = arith.subi %22, %25 : vector<48x1xi32>
    %27 = arith.select %24, %26, %22 : vector<48x1xi1>, vector<48x1xi32>
    %c8_i32_10 = arith.constant 8 : i32
    %28 = vector.broadcast %c8_i32_10 : i32 to vector<48x1xi32>
    %29 = arith.cmpi sge, %27, %28 : vector<48x1xi32>
    %c8_i32_11 = arith.constant 8 : i32
    %30 = vector.broadcast %c8_i32_11 : i32 to vector<48x1xi32>
    %31 = arith.subi %27, %30 : vector<48x1xi32>
    %32 = arith.select %29, %31, %27 : vector<48x1xi1>, vector<48x1xi32>
    %c8_i32_12 = arith.constant 8 : i32
    %33 = vector.broadcast %c8_i32_12 : i32 to vector<48x1xi32>
    %34 = arith.cmpi sge, %32, %33 : vector<48x1xi32>
    %c8_i32_13 = arith.constant 8 : i32
    %35 = vector.broadcast %c8_i32_13 : i32 to vector<48x1xi32>
    %36 = arith.subi %32, %35 : vector<48x1xi32>
    %37 = arith.select %34, %36, %32 : vector<48x1xi1>, vector<48x1xi32>
    %38 = arith.subi %11, %37 : vector<48x1xi32>
    %39 = vector.broadcast %38 : vector<48x1xi32> to vector<48x48xi32>
    %40 = arith.cmpi sge, %12, %39 : vector<48x48xi32>
    %c8_i32_14 = arith.constant 8 : i32
    %41 = vector.broadcast %c8_i32_14 : i32 to vector<48x1xi32>
    %42 = arith.addi %38, %41 : vector<48x1xi32>
    %43 = vector.broadcast %42 : vector<48x1xi32> to vector<48x48xi32>
    %44 = arith.cmpi slt, %12, %43 : vector<48x48xi32>
    %45 = arith.andi %40, %44 : vector<48x48xi1>
    %cst_15 = arith.constant 0.000000e+00 : f32
    %cst_16 = arith.constant -1.000000e+30 : f32
    %46 = vector.broadcast %cst_15 : f32 to vector<48x48xf32>
    %47 = vector.broadcast %cst_16 : f32 to vector<48x48xf32>
    %48 = arith.select %45, %46, %47 : vector<48x48xi1>, vector<48x48xf32>
    %49 = arith.addf %10, %48 : vector<48x48xf32>
    %cst_17 = arith.constant dense<0xFF800000> : vector<48xf32>
    %50 = vector.multi_reduction <maximumf>, %49, %cst_17 [1] : vector<48x48xf32> to vector<48xf32>
    %51 = vector.shape_cast %50 : vector<48xf32> to vector<48x1xf32>
    %52 = vector.broadcast %51 : vector<48x1xf32> to vector<48x48xf32>
    %53 = arith.subf %49, %52 : vector<48x48xf32>
    %54 = math.exp %53 : vector<48x48xf32>
    %cst_18 = arith.constant dense<0.000000e+00> : vector<48xf32>
    %55 = vector.multi_reduction <add>, %54, %cst_18 [1] : vector<48x48xf32> to vector<48xf32>
    %56 = vector.shape_cast %55 : vector<48xf32> to vector<48x1xf32>
    %57 = tpu.reciprocal %56 {approx = true} : vector<48x1xf32> -> vector<48x1xf32>
    %58 = vector.broadcast %57 : vector<48x1xf32> to vector<48x48xf32>
    %59 = arith.mulf %54, %58 : vector<48x48xf32>
    %60 = arith.truncf %59 : vector<48x48xf32> to vector<48x48xbf16>
    %61 = arith.truncf %5 : vector<48x384xf32> to vector<48x384xbf16>
    %cst_19 = arith.constant dense<0.000000e+00> : vector<48x384xf32>
    %62 = tpu.matmul %60, %61, %cst_19 {dimension_numbers = #tpu.dot_dimension_numbers<[1], [0], [0], [1], [0, 0, 1, 1], [], []>} : vector<48x48xbf16>, vector<48x384xbf16>, vector<48x384xf32> -> vector<48x384xf32>
    %c24_i32 = arith.constant 24 : i32
    %63 = vector.broadcast %c24_i32 : i32 to vector<48x1xi32>
    %64 = arith.cmpi sge, %11, %63 : vector<48x1xi32>
    %c24_i32_20 = arith.constant 24 : i32
    %65 = vector.broadcast %c24_i32_20 : i32 to vector<48x1xi32>
    %66 = arith.subi %11, %65 : vector<48x1xi32>
    %67 = arith.select %64, %66, %11 : vector<48x1xi1>, vector<48x1xi32>
    %68 = tpu.iota {dimensions = array<i32: 1>} : vector<48x384xi32>
    %c16_i32 = arith.constant 16 : i32
    %69 = vector.broadcast %c16_i32 : i32 to vector<48x1xi32>
    %70 = arith.muli %67, %69 : vector<48x1xi32>
    %71 = vector.broadcast %70 : vector<48x1xi32> to vector<48x384xi32>
    %72 = arith.cmpi sge, %68, %71 : vector<48x384xi32>
    %c16_i32_21 = arith.constant 16 : i32
    %73 = vector.broadcast %c16_i32_21 : i32 to vector<48x1xi32>
    %74 = arith.muli %67, %73 : vector<48x1xi32>
    %c16_i32_22 = arith.constant 16 : i32
    %75 = vector.broadcast %c16_i32_22 : i32 to vector<48x1xi32>
    %76 = arith.addi %74, %75 : vector<48x1xi32>
    %77 = vector.broadcast %76 : vector<48x1xi32> to vector<48x384xi32>
    %78 = arith.cmpi slt, %68, %77 : vector<48x384xi32>
    %79 = arith.andi %72, %78 : vector<48x384xi1>
    %cst_23 = arith.constant 0.000000e+00 : f32
    %80 = vector.broadcast %cst_23 : f32 to vector<48x384xf32>
    %81 = arith.select %79, %62, %80 : vector<48x384xi1>, vector<48x384xf32>
    %82 = tpu.iota {dimensions = array<i32: 0>} : vector<2x48xi32>
    %83 = tpu.iota {dimensions = array<i32: 1>} : vector<2x48xi32>
    %c24_i32_24 = arith.constant 24 : i32
    %84 = vector.broadcast %c24_i32_24 : i32 to vector<2x48xi32>
    %85 = arith.muli %82, %84 : vector<2x48xi32>
    %86 = arith.cmpi sge, %83, %85 : vector<2x48xi32>
    %c24_i32_25 = arith.constant 24 : i32
    %87 = vector.broadcast %c24_i32_25 : i32 to vector<2x48xi32>
    %88 = arith.muli %82, %87 : vector<2x48xi32>
    %c24_i32_26 = arith.constant 24 : i32
    %89 = vector.broadcast %c24_i32_26 : i32 to vector<2x48xi32>
    %90 = arith.addi %88, %89 : vector<2x48xi32>
    %91 = arith.cmpi slt, %83, %90 : vector<2x48xi32>
    %92 = arith.andi %86, %91 : vector<2x48xi1>
    %93 = arith.extui %92 : vector<2x48xi1> to vector<2x48xi32>
    %94 = arith.sitofp %93 : vector<2x48xi32> to vector<2x48xf32>
    %95 = arith.truncf %94 : vector<2x48xf32> to vector<2x48xbf16>
    %96 = arith.truncf %81 : vector<48x384xf32> to vector<48x384xbf16>
    %cst_27 = arith.constant dense<0.000000e+00> : vector<2x384xf32>
    %97 = tpu.matmul %95, %96, %cst_27 {dimension_numbers = #tpu.dot_dimension_numbers<[1], [0], [0], [1], [0, 0, 1, 1], [], []>} : vector<2x48xbf16>, vector<48x384xbf16>, vector<2x384xf32> -> vector<2x384xf32>
    %98 = arith.truncf %97 : vector<2x384xf32> to vector<2x384xbf16>
    %c0_28 = arith.constant 0 : index
    %c0_29 = arith.constant 0 : index
    %99 = vector.load %arg2[%c0_28, %c0_29] : memref<384x64xbf16, #tpu.memory_space<vmem>>, vector<384x64xbf16>
    %cst_30 = arith.constant dense<0.000000e+00> : vector<2x64xf32>
    %100 = tpu.matmul %98, %99, %cst_30 {dimension_numbers = #tpu.dot_dimension_numbers<[1], [0], [0], [1], [0, 0, 1, 1], [], []>} : vector<2x384xbf16>, vector<384x64xbf16>, vector<2x64xf32> -> vector<2x64xf32>
    %c0_31 = arith.constant 0 : index
    %c0_32 = arith.constant 0 : index
    %101 = vector.load %arg4[%c0_31, %c0_32] : memref<3x64xf32, #tpu.memory_space<vmem>>, vector<1x64xf32>
    %102 = vector.broadcast %101 : vector<1x64xf32> to vector<2x64xf32>
    %103 = arith.addf %100, %102 : vector<2x64xf32>
    %cst_33 = arith.constant 0.000000e+00 : f32
    %104 = vector.broadcast %cst_33 : f32 to vector<2x64xf32>
    %105 = arith.maximumf %103, %104 : vector<2x64xf32>
    %106 = arith.truncf %105 : vector<2x64xf32> to vector<2x64xbf16>
    %c0_34 = arith.constant 0 : index
    %c0_35 = arith.constant 0 : index
    %c0_36 = arith.constant 0 : index
    %107 = vector.load %arg3[%c0_34, %c0_35, %c0_36] : memref<2x64x64xbf16, #tpu.memory_space<vmem>>, vector<1x64x64xbf16>
    %108 = vector.shape_cast %107 : vector<1x64x64xbf16> to vector<64x64xbf16>
    %cst_37 = arith.constant dense<0.000000e+00> : vector<2x64xf32>
    %109 = tpu.matmul %106, %108, %cst_37 {dimension_numbers = #tpu.dot_dimension_numbers<[1], [0], [0], [1], [0, 0, 1, 1], [], []>} : vector<2x64xbf16>, vector<64x64xbf16>, vector<2x64xf32> -> vector<2x64xf32>
    %c1 = arith.constant 1 : index
    %c0_38 = arith.constant 0 : index
    %110 = vector.load %arg4[%c1, %c0_38] : memref<3x64xf32, #tpu.memory_space<vmem>>, vector<1x64xf32>
    %111 = vector.broadcast %110 : vector<1x64xf32> to vector<2x64xf32>
    %112 = arith.addf %109, %111 : vector<2x64xf32>
    %cst_39 = arith.constant 0.000000e+00 : f32
    %113 = vector.broadcast %cst_39 : f32 to vector<2x64xf32>
    %114 = arith.maximumf %112, %113 : vector<2x64xf32>
    %115 = arith.truncf %114 : vector<2x64xf32> to vector<2x64xbf16>
    %c1_40 = arith.constant 1 : index
    %c0_41 = arith.constant 0 : index
    %c0_42 = arith.constant 0 : index
    %116 = vector.load %arg3[%c1_40, %c0_41, %c0_42] : memref<2x64x64xbf16, #tpu.memory_space<vmem>>, vector<1x64x64xbf16>
    %117 = vector.shape_cast %116 : vector<1x64x64xbf16> to vector<64x64xbf16>
    %cst_43 = arith.constant dense<0.000000e+00> : vector<2x64xf32>
    %118 = tpu.matmul %115, %117, %cst_43 {dimension_numbers = #tpu.dot_dimension_numbers<[1], [0], [0], [1], [0, 0, 1, 1], [], []>} : vector<2x64xbf16>, vector<64x64xbf16>, vector<2x64xf32> -> vector<2x64xf32>
    %c2 = arith.constant 2 : index
    %c0_44 = arith.constant 0 : index
    %119 = vector.load %arg4[%c2, %c0_44] : memref<3x64xf32, #tpu.memory_space<vmem>>, vector<1x64xf32>
    %120 = vector.broadcast %119 : vector<1x64xf32> to vector<2x64xf32>
    %121 = arith.addf %118, %120 : vector<2x64xf32>
    %122 = vector.extract_strided_slice %121 {offsets = [0, 0], sizes = [2, 41], strides = [1, 1]} : vector<2x64xf32> to vector<2x41xf32>
    %c0_45 = arith.constant 0 : index
    %c0_46 = arith.constant 0 : index
    %123 = vector.load %arg5[%c0_45, %c0_46] : memref<2x41xf32, #tpu.memory_space<vmem>>, vector<2x41xf32>
    tpu.vector_store %arg5[%c0_45, %c0_46], %122 {strides = array<i32>} : memref<2x41xf32, #tpu.memory_space<vmem>>, vector<2x41xf32>,
    return
  }
}

</mosaic_0001>

<llo_original>
// kernel: classifier_forward.1
$region0: #{classifier_forward.1}
  #allocation0 [shape = 'u32[]', space=smem, size = 0x4, offset = 0x4, fixed_abs, tag = 'smem constant byte address 0x4 - core index']
  #allocation1 [shape = 'u32[72,128]{1,0:T(1,128)}', space=vmem, size = 0x9000, scoped, tag = 'internal scratch']
  %s0 = inlined_call_operand.vmem [shape: bf16[48,120], index: 0, kind: input, shape index: {}]
  %s1 = inlined_call_operand.vmem [shape: bf16[120,640], index: 1, kind: input, shape index: {}]
  %s2 = inlined_call_operand.vmem [shape: bf16[384,64], index: 2, kind: input, shape index: {}]
  %s3 = inlined_call_operand.vmem [shape: bf16[2,64,64], index: 3, kind: input, shape index: {}]
  %s4 = inlined_call_operand.vmem [shape: f32[3,64], index: 4, kind: input, shape index: {}]
  %s5 = inlined_call_operand.hbm [shape: f32[2,41], index: 5, kind: output, shape index: {}]
  %s6 = sld [smem:[#allocation0]]
  $region30: #{classifier_forward.1} parent=0
    _
  %s8 = ssub.s32 1, %s6
  %s9 = scalar_select 0, %s8, %s6
  $region1: #{classifier_forward.1} parent=0
    #allocation2 [shape = 'u8[1024]{0}', space=vmem, size = 0x400, scoped, tag = 'output window, operand 0, single buffered']
    #allocation3 [shape = 's32[1]{0}', space=sflag, size = 0x4, scoped, tag = 'scoped memory for classifier_forward.1']
    %10 = vsyncpa [#allocation3], 0
    // Predicated region
    $region2: #{classifier_forward.1} parent=1 // pred_check
      _
    $region3: #{classifier_forward.1} parent=1 // pred_check_branch
      %12 = sbr.rel (0) target = $region5
    $region4: #{classifier_forward.1} parent=1 // pred_region
      _
    $region5: #{classifier_forward.1} parent=1 // pred_fallthru
      _
    // Predicated region
    $region6: #{classifier_forward.1} parent=1 // pred_check
      _
    $region7: #{classifier_forward.1} parent=1 // pred_check_branch
      %14 = sbr.rel (0) target = $region9
    $region8: #{classifier_forward.1} parent=1 // pred_region
      _
    $region9: #{classifier_forward.1} parent=1 // pred_fallthru
      _
    // Predicated region
    $region10: #{classifier_forward.1} parent=1 // pred_check
      _
    $region11: #{classifier_forward.1} parent=1 // pred_check_branch
      %16 = sbr.rel (0) target = $region13
    $region12: #{classifier_forward.1} parent=1 // pred_region
      _
    $region13: #{classifier_forward.1} parent=1 // pred_fallthru
      _
    // Predicated region
    $region14: #{classifier_forward.1} parent=1 // pred_check
      _
    $region15: #{classifier_forward.1} parent=1 // pred_check_branch
      %18 = sbr.rel (0) target = $region17
    $region16: #{classifier_forward.1} parent=1 // pred_region
      _
    $region17: #{classifier_forward.1} parent=1 // pred_fallthru
      _
    // Predicated region
    $region18: #{classifier_forward.1} parent=1 // pred_check
      _
    $region19: #{classifier_forward.1} parent=1 // pred_check_branch
      %20 = sbr.rel (0) target = $region21
    $region20: #{classifier_forward.1} parent=1 // pred_region
      _
    $region21: #{classifier_forward.1} parent=1 // pred_fallthru
      _
    %v22 = vld [vmem:[%s0] sm:$0xf]
    %v23 = vld [vmem:[%s0 + $0x4] sm:$0xf]
    %v24 = vld [vmem:[%s0 + $0x8] sm:$0xf]
    %v25 = vld [vmem:[%s0 + $0xc] sm:$0xf]
    %v26 = vld [vmem:[%s0 + $0x10] sm:$0xf]
    %v27 = vld [vmem:[%s0 + $0x14] sm:$0xf]
    %v28 = vld [vmem:[%s1] sm:$0xff]
    %v29 = vld [vmem:[%s1 + $0x8] sm:$0xff]
    %v30 = vld [vmem:[%s1 + $0x10] sm:$0xf]
    %v31 = vld [vmem:[%s1 + $0x14] sm:$0xff]
    %v32 = vld [vmem:[%s1 + $0x1c] sm:$0xff]
    %v33 = vld [vmem:[%s1 + $0x24] sm:$0xf]
    %v34 = vld [vmem:[%s1 + $0x28] sm:$0xff]
    %v35 = vld [vmem:[%s1 + $0x30] sm:$0xff]
    %v36 = vld [vmem:[%s1 + $0x38] sm:$0xf]
    %v37 = vld [vmem:[%s1 + $0x3c] sm:$0xff]
    %v38 = vld [vmem:[%s1 + $0x44] sm:$0xff]
    %v39 = vld [vmem:[%s1 + $0x4c] sm:$0xf]
    %v40 = vld [vmem:[%s1 + $0x50] sm:$0xff]
    %v41 = vld [vmem:[%s1 + $0x58] sm:$0xff]
    %v42 = vld [vmem:[%s1 + $0x60] sm:$0xf]
    %v43 = vld [vmem:[%s1 + $0x64] sm:$0xff]
    %v44 = vld [vmem:[%s1 + $0x6c] sm:$0xff]
    %v45 = vld [vmem:[%s1 + $0x74] sm:$0xf]
    %v46 = vld [vmem:[%s1 + $0x78] sm:$0xff]
    %v47 = vld [vmem:[%s1 + $0x80] sm:$0xff]
    %v48 = vld [vmem:[%s1 + $0x88] sm:$0xf]
    %v49 = vld [vmem:[%s1 + $0x8c] sm:$0xff]
    %v50 = vld [vmem:[%s1 + $0x94] sm:$0xff]
    %v51 = vld [vmem:[%s1 + $0x9c] sm:$0xf]
    %v52 = vld [vmem:[%s1 + $0xa0] sm:$0xff]
    %v53 = vld [vmem:[%s1 + $0xa8] sm:$0xff]
    %v54 = vld [vmem:[%s1 + $0xb0] sm:$0xf]
    %v55 = vld [vmem:[%s1 + $0xb4] sm:$0xff]
    %v56 = vld [vmem:[%s1 + $0xbc] sm:$0xff]
    %v57 = vld [vmem:[%s1 + $0xc4] sm:$0xf]
    %v58 = vld [vmem:[%s1 + $0xc8] sm:$0xff]
    %v59 = vld [vmem:[%s1 + $0xd0] sm:$0xff]
    %v60 = vld [vmem:[%s1 + $0xd8] sm:$0xf]
    %v61 = vld [vmem:[%s1 + $0xdc] sm:$0xff]
    %v62 = vld [vmem:[%s1 + $0xe4] sm:$0xff]
    %v63 = vld [vmem:[%s1 + $0xec] sm:$0xf]
    %v64 = vld [vmem:[%s1 + $0xf0] sm:$0xff]
    %v65 = vld [vmem:[%s1 + $0xf8] sm:$0xff]
    %v66 = vld [vmem:[%s1 + $0x100] sm:$0xf]
    %v67 = vld [vmem:[%s1 + $0x104] sm:$0xff]
    %v68 = vld [vmem:[%s1 + $0x10c] sm:$0xff]
    %v69 = vld [vmem:[%s1 + $0x114] sm:$0xf]
    %v70 = vld [vmem:[%s1 + $0x118] sm:$0xff]
    %v71 = vld [vmem:[%s1 + $0x120] sm:$0xff]
    %v72 = vld [vmem:[%s1 + $0x128] sm:$0xf]
    %v79 = vunpack.c.l.b16 %v22
    %v80 = vunpack.c.l.b16 %v23
    %v81 = vunpack.c.l.b16 %v24
    %v82 = vunpack.c.l.b16 %v25
    %v83 = vunpack.c.l.b16 %v26
    %v84 = vunpack.c.l.b16 %v27
    %v85 = vpack.c.b16 %v80, %v79
    %v86 = vpack.c.b16 %v82, %v81
    %v87 = vpack.c.b16 %v84, %v83
    %v133 = vunpack.c.l.b16 %v28
    %v134 = vunpack.c.h.b16 %v28
    %v135 = vunpack.c.l.b16 %v29
    %v136 = vunpack.c.h.b16 %v29
    %v137 = vunpack.c.l.b16 %v30
    %v138 = vunpack.c.l.b16 %v31
    %v139 = vunpack.c.h.b16 %v31
    %v140 = vunpack.c.l.b16 %v32
    %v141 = vunpack.c.h.b16 %v32
    %v142 = vunpack.c.l.b16 %v33
    %v143 = vunpack.c.l.b16 %v34
    %v144 = vunpack.c.h.b16 %v34
    %v145 = vunpack.c.l.b16 %v35
    %v146 = vunpack.c.h.b16 %v35
    %v147 = vunpack.c.l.b16 %v36
    %v148 = vunpack.c.l.b16 %v37
    %v149 = vunpack.c.h.b16 %v37
    %v150 = vunpack.c.l.b16 %v38
    %v151 = vunpack.c.h.b16 %v38
    %v152 = vunpack.c.l.b16 %v39
    %v153 = vunpack.c.l.b16 %v40
    %v154 = vunpack.c.h.b16 %v40
    %v155 = vunpack.c.l.b16 %v41
    %v156 = vunpack.c.h.b16 %v41
    %v157 = vunpack.c.l.b16 %v42
    %v158 = vunpack.c.l.b16 %v43
    %v159 = vunpack.c.h.b16 %v43
    %v160 = vunpack.c.l.b16 %v44
    %v161 = vunpack.c.h.b16 %v44
    %v162 = vunpack.c.l.b16 %v45
    %v163 = vunpack.c.l.b16 %v46
    %v164 = vunpack.c.h.b16 %v46
    %v165 = vunpack.c.l.b16 %v47
    %v166 = vunpack.c.h.b16 %v47
    %v167 = vunpack.c.l.b16 %v48
    %v168 = vunpack.c.l.b16 %v49
    %v169 = vunpack.c.h.b16 %v49
    %v170 = vunpack.c.l.b16 %v50
    %v171 = vunpack.c.h.b16 %v50
    %v172 = vunpack.c.l.b16 %v51
    %v173 = vunpack.c.l.b16 %v52
    %v174 = vunpack.c.h.b16 %v52
    %v175 = vunpack.c.l.b16 %v53
    %v176 = vunpack.c.h.b16 %v53
    %v177 = vunpack.c.l.b16 %v54
    %v178 = vunpack.c.l.b16 %v55
    %v179 = vunpack.c.h.b16 %v55
    %v180 = vunpack.c.l.b16 %v56
    %v181 = vunpack.c.h.b16 %v56
    %v182 = vunpack.c.l.b16 %v57
    %v183 = vunpack.c.l.b16 %v58
    %v184 = vunpack.c.h.b16 %v58
    %v185 = vunpack.c.l.b16 %v59
    %v186 = vunpack.c.h.b16 %v59
    %v187 = vunpack.c.l.b16 %v60
    %v188 = vunpack.c.l.b16 %v61
    %v189 = vunpack.c.h.b16 %v61
    %v190 = vunpack.c.l.b16 %v62
    %v191 = vunpack.c.h.b16 %v62
    %v192 = vunpack.c.l.b16 %v63
    %v193 = vunpack.c.l.b16 %v64
    %v194 = vunpack.c.h.b16 %v64
    %v195 = vunpack.c.l.b16 %v65
    %v196 = vunpack.c.h.b16 %v65
    %v197 = vunpack.c.l.b16 %v66
    %v198 = vunpack.c.l.b16 %v67
    %v199 = vunpack.c.h.b16 %v67
    %v200 = vunpack.c.l.b16 %v68
    %v201 = vunpack.c.h.b16 %v68
    %v202 = vunpack.c.l.b16 %v69
    %v203 = vunpack.c.l.b16 %v70
    %v204 = vunpack.c.h.b16 %v70
    %v205 = vunpack.c.l.b16 %v71
    %v206 = vunpack.c.h.b16 %v71
    %v207 = vunpack.c.l.b16 %v72
    %v208 = vpack.c.b16 %v138, %v133
    %v209 = vpack.c.b16 %v139, %v134
    %v210 = vpack.c.b16 %v140, %v135
    %v211 = vpack.c.b16 %v141, %v136
    %v212 = vpack.c.b16 %v142, %v137
    %v213 = vpack.c.b16 %v148, %v143
    %v214 = vpack.c.b16 %v149, %v144
    %v215 = vpack.c.b16 %v150, %v145
    %v216 = vpack.c.b16 %v151, %v146
    %v217 = vpack.c.b16 %v152, %v147
    %v218 = vpack.c.b16 %v158, %v153
    %v219 = vpack.c.b16 %v159, %v154
    %v220 = vpack.c.b16 %v160, %v155
    %v221 = vpack.c.b16 %v161, %v156
    %v222 = vpack.c.b16 %v162, %v157
    %v223 = vpack.c.b16 %v168, %v163
    %v224 = vpack.c.b16 %v169, %v164
    %v225 = vpack.c.b16 %v170, %v165
    %v226 = vpack.c.b16 %v171, %v166
    %v227 = vpack.c.b16 %v172, %v167
    %v228 = vpack.c.b16 %v178, %v173
    %v229 = vpack.c.b16 %v179, %v174
    %v230 = vpack.c.b16 %v180, %v175
    %v231 = vpack.c.b16 %v181, %v176
    %v232 = vpack.c.b16 %v182, %v177
    %v233 = vpack.c.b16 %v188, %v183
    %v234 = vpack.c.b16 %v189, %v184
    %v235 = vpack.c.b16 %v190, %v185
    %v236 = vpack.c.b16 %v191, %v186
    %v237 = vpack.c.b16 %v192, %v187
    %v238 = vpack.c.b16 %v198, %v193
    %v239 = vpack.c.b16 %v199, %v194
    %v240 = vpack.c.b16 %v200, %v195
    %v241 = vpack.c.b16 %v201, %v196
    %v242 = vpack.c.b16 %v202, %v197
    %v243 = vpack.c.b16 %v203, %v203
    %v244 = vpack.c.b16 %v204, %v204
    %v245 = vpack.c.b16 %v205, %v205
    %v246 = vpack.c.b16 %v206, %v206
    %v247 = vpack.c.b16 %v207, %v207
    %vm283 = vcmask 982016
    %v285 = vsel %vm283, %v85, 0
    %v288 = vsel %vm283, %v86, 0
    %v291 = vsel %vm283, %v87, 0
    %vm293 = vcmask 1043456
    %v295 = vsel %vm293, %v243, 0
    %v298 = vsel %vm293, %v244, 0
    %v301 = vsel %vm293, %v245, 0
    %v304 = vsel %vm293, %v246, 0
    %v307 = vsel %vm293, %v247, 0
    %309 = vmatpush.bf16.msra.mxu0 %v295
    %310 = vmatpush.bf16.msra.mxu0 %v238
    %311 = vmatpush.bf16.msra.mxu0 %v233
    %312 = vmatpush.bf16.msra.mxu0 %v228
    %313 = vmatpush.bf16.msra.mxu0 %v223
    %314 = vmatpush.bf16.msra.mxu0 %v218
    %315 = vmatpush.bf16.msra.mxu0 %v213
    %316 = vmatpush.bf16.msra.mxu0 %v208
    %317 = vmatmul.bf16.gmra.mxu0 %v285
    %v318 = vpop.f32.mrf.mxu0
    %v319 = vadd.f32 0.0, %v318
    %v320 = vpop.f32.mrf.mxu0
    %v321 = vadd.f32 0.0, %v320
    %322 = vmatmul.bf16.gmra.mxu0 %v288
    %v323 = vpop.f32.mrf.mxu0
    %v324 = vadd.f32 0.0, %v323
    %v325 = vpop.f32.mrf.mxu0
    %v326 = vadd.f32 0.0, %v325
    %327 = vmatmul.bf16.gmra.mxu0 %v291
    %v328 = vpop.f32.mrf.mxu0
    %v329 = vadd.f32 0.0, %v328
    %v330 = vpop.f32.mrf.mxu0
    %v331 = vadd.f32 0.0, %v330
    %332 = vdwg.mxu0
    %333 = vmatpush.bf16.msra.mxu0 %v298
    %334 = vmatpush.bf16.msra.mxu0 %v239
    %335 = vmatpush.bf16.msra.mxu0 %v234
    %336 = vmatpush.bf16.msra.mxu0 %v229
    %337 = vmatpush.bf16.msra.mxu0 %v224
    %338 = vmatpush.bf16.msra.mxu0 %v219
    %339 = vmatpush.bf16.msra.mxu0 %v214
    %340 = vmatpush.bf16.msra.mxu0 %v209
    %341 = vmatmul.bf16.gmra.mxu0 %v285
    %v342 = vpop.f32.mrf.mxu0
    %v343 = vadd.f32 0.0, %v342
    %v344 = vpop.f32.mrf.mxu0
    %v345 = vadd.f32 0.0, %v344
    %346 = vmatmul.bf16.gmra.mxu0 %v288
    %v347 = vpop.f32.mrf.mxu0
    %v348 = vadd.f32 0.0, %v347
    %v349 = vpop.f32.mrf.mxu0
    %v350 = vadd.f32 0.0, %v349
    %351 = vmatmul.bf16.gmra.mxu0 %v291
    %v352 = vpop.f32.mrf.mxu0
    %v353 = vadd.f32 0.0, %v352
    %v354 = vpop.f32.mrf.mxu0
    %v355 = vadd.f32 0.0, %v354
    %356 = vdwg.mxu0
    %357 = vmatpush.bf16.msra.mxu0 %v301
    %358 = vmatpush.bf16.msra.mxu0 %v240
    %359 = vmatpush.bf16.msra.mxu0 %v235
    %360 = vmatpush.bf16.msra.mxu0 %v230
    %361 = vmatpush.bf16.msra.mxu0 %v225
    %362 = vmatpush.bf16.msra.mxu0 %v220
    %363 = vmatpush.bf16.msra.mxu0 %v215
    %364 = vmatpush.bf16.msra.mxu0 %v210
    %365 = vmatmul.bf16.gmra.mxu0 %v285
    %v366 = vpop.f32.mrf.mxu0
    %v367 = vadd.f32 0.0, %v366
    %v368 = vpop.f32.mrf.mxu0
    %v369 = vadd.f32 0.0, %v368
    %370 = vmatmul.bf16.gmra.mxu0 %v288
    %v371 = vpop.f32.mrf.mxu0
    %v372 = vadd.f32 0.0, %v371
    %v373 = vpop.f32.mrf.mxu0
    %v374 = vadd.f32 0.0, %v373
    %375 = vmatmul.bf16.gmra.mxu0 %v291
    %v376 = vpop.f32.mrf.mxu0
    %v377 = vadd.f32 0.0, %v376
    %v378 = vpop.f32.mrf.mxu0
    %v379 = vadd.f32 0.0, %v378
    %380 = vdwg.mxu0
    %381 = vmatpush.bf16.msra.mxu0 %v304
    %382 = vmatpush.bf16.msra.mxu0 %v241
    %383 = vmatpush.bf16.msra.mxu0 %v236
    %384 = vmatpush.bf16.msra.mxu0 %v231
    %385 = vmatpush.bf16.msra.mxu0 %v226
    %386 = vmatpush.bf16.msra.mxu0 %v221
    %387 = vmatpush.bf16.msra.mxu0 %v216
    %388 = vmatpush.bf16.msra.mxu0 %v211
    %389 = vmatmul.bf16.gmra.mxu0 %v285
    %v390 = vpop.f32.mrf.mxu0
    %v391 = vadd.f32 0.0, %v390
    %v392 = vpop.f32.mrf.mxu0
    %v393 = vadd.f32 0.0, %v392
    %394 = vmatmul.bf16.gmra.mxu0 %v288
    %v395 = vpop.f32.mrf.mxu0
    %v396 = vadd.f32 0.0, %v395
    %v397 = vpop.f32.mrf.mxu0
    %v398 = vadd.f32 0.0, %v397
    %399 = vmatmul.bf16.gmra.mxu0 %v291
    %v400 = vpop.f32.mrf.mxu0
    %v401 = vadd.f32 0.0, %v400
    %v402 = vpop.f32.mrf.mxu0
    %v403 = vadd.f32 0.0, %v402
    %404 = vdwg.mxu0
    %405 = vmatpush.bf16.msra.mxu0 %v307
    %406 = vmatpush.bf16.msra.mxu0 %v242
    %407 = vmatpush.bf16.msra.mxu0 %v237
    %408 = vmatpush.bf16.msra.mxu0 %v232
    %409 = vmatpush.bf16.msra.mxu0 %v227
    %410 = vmatpush.bf16.msra.mxu0 %v222
    %411 = vmatpush.bf16.msra.mxu0 %v217
    %412 = vmatpush.bf16.msra.mxu0 %v212
    %413 = vmatmul.bf16.gmra.mxu0 %v285
    %v414 = vpop.f32.mrf.mxu0
    %v415 = vadd.f32 0.0, %v414
    %v416 = vpop.f32.mrf.mxu0
    %v417 = vadd.f32 0.0, %v416
    %418 = vmatmul.bf16.gmra.mxu0 %v288
    %v419 = vpop.f32.mrf.mxu0
    %v420 = vadd.f32 0.0, %v419
    %v421 = vpop.f32.mrf.mxu0
    %v422 = vadd.f32 0.0, %v421
    %423 = vmatmul.bf16.gmra.mxu0 %v291
    %v424 = vpop.f32.mrf.mxu0
    %v425 = vadd.f32 0.0, %v424
    %v426 = vpop.f32.mrf.mxu0
    %v427 = vadd.f32 0.0, %v426
    %428 = vdwg.mxu0
    %v429 = vpack.c.bf16 %v321, %v319
    %v430 = vpack.c.bf16 %v326, %v324
    %v431 = vpack.c.bf16 %v331, %v329
    %v432 = vpack.c.bf16 %v345, %v343
    %v433 = vpack.c.bf16 %v350, %v348
    %v434 = vpack.c.bf16 %v355, %v353
    %435 = vmatpush.bf16.xpose.msra.mxu0 0
    %436 = vmatpush.bf16.xpose.msra.mxu0 0
    %437 = vmatpush.bf16.xpose.msra.mxu0 0
    %438 = vmatpush.bf16.xpose.msra.mxu0 0
    %439 = vmatpush.bf16.xpose.msra.mxu0 0
    %440 = vmatpush.bf16.xpose.msra.mxu0 %v434
    %441 = vmatpush.bf16.xpose.msra.mxu0 %v433
    %442 = vmatpush.bf16.xpose.msra.mxu0 %v432
    %443 = vmatmul.bf16.gmra.mxu0 %v429
    %v444 = vpop.f32.mrf.mxu0
    %v445 = vadd.f32 0.0, %v444
    %v446 = vpop.f32.mrf.mxu0
    %v447 = vadd.f32 0.0, %v446
    %448 = vmatmul.bf16.gmra.mxu0 %v430
    %v449 = vpop.f32.mrf.mxu0
    %v450 = vadd.f32 0.0, %v449
    %v451 = vpop.f32.mrf.mxu0
    %v452 = vadd.f32 0.0, %v451
    %453 = vmatmul.bf16.gmra.mxu0 %v431
    %v454 = vpop.f32.mrf.mxu0
    %v455 = vadd.f32 0.0, %v454
    %v456 = vpop.f32.mrf.mxu0
    %v457 = vadd.f32 0.0, %v456
    %458 = vdwg.mxu0
    %v459 = vmul.f32 %v445, 0.2773501
    %v460 = vmul.f32 %v447, 0.2773501
    %v461 = vmul.f32 %v450, 0.2773501
    %v462 = vmul.f32 %v452, 0.2773501
    %v463 = vmul.f32 %v455, 0.2773501
    %v464 = vmul.f32 %v457, 0.2773501
    %v465 = vlaneseq
    %v466 = vshrl.u32 %v465, 7
    %v467 = vadd.s32 %v466, 8
    %v468 = vadd.s32 %v466, 16
    %v469 = vadd.s32 %v466, 24
    %v470 = vadd.s32 %v466, 32
    %v471 = vadd.s32 %v466, 40
    %v472 = vlaneseq
    %v473 = vand.u32 %v472, 127
    %vm474 = vcmp.ge.s32.totalorder %v466, 8
    %vm475 = vcmp.ge.s32.totalorder %v467, 8
    %vm476 = vcmp.ge.s32.totalorder %v468, 8
    %vm477 = vcmp.ge.s32.totalorder %v469, 8
    %vm478 = vcmp.ge.s32.totalorder %v470, 8
    %vm479 = vcmp.ge.s32.totalorder %v471, 8
    %v480 = vsub.s32 %v466, 8
    %v481 = vsub.s32 %v468, 8
    %v482 = vsub.s32 %v469, 8
    %v483 = vsub.s32 %v470, 8
    %v484 = vsub.s32 %v471, 8
    %v485 = vsel %vm474, %v480, %v466
    %v486 = vsel %vm475, %v466, %v467
    %v487 = vsel %vm476, %v481, %v468
    %v488 = vsel %vm477, %v482, %v469
    %v489 = vsel %vm478, %v483, %v470
    %v490 = vsel %vm479, %v484, %v471
    %vm491 = vcmp.ge.s32.totalorder %v485, 8
    %vm492 = vcmp.ge.s32.totalorder %v486, 8
    %vm493 = vcmp.ge.s32.totalorder %v487, 8
    %vm494 = vcmp.ge.s32.totalorder %v488, 8
    %vm495 = vcmp.ge.s32.totalorder %v489, 8
    %vm496 = vcmp.ge.s32.totalorder %v490, 8
    %v497 = vsub.s32 %v485, 8
    %v498 = vsub.s32 %v486, 8
    %v499 = vsub.s32 %v487, 8
    %v500 = vsub.s32 %v488, 8
    %v501 = vsub.s32 %v489, 8
    %v502 = vsub.s32 %v490, 8
    %v503 = vsel %vm491, %v497, %v485
    %v504 = vsel %vm492, %v498, %v486
    %v505 = vsel %vm493, %v499, %v487
    %v506 = vsel %vm494, %v500, %v488
    %v507 = vsel %vm495, %v501, %v489
    %v508 = vsel %vm496, %v502, %v490
    %vm509 = vcmp.ge.s32.totalorder %v503, 8
    %vm510 = vcmp.ge.s32.totalorder %v504, 8
    %vm511 = vcmp.ge.s32.totalorder %v505, 8
    %vm512 = vcmp.ge.s32.totalorder %v506, 8
    %vm513 = vcmp.ge.s32.totalorder %v507, 8
    %vm514 = vcmp.ge.s32.totalorder %v508, 8
    %v515 = vsub.s32 %v503, 8
    %v516 = vsub.s32 %v504, 8
    %v517 = vsub.s32 %v505, 8
    %v518 = vsub.s32 %v506, 8
    %v519 = vsub.s32 %v507, 8
    %v520 = vsub.s32 %v508, 8
    %v521 = vsel %vm509, %v515, %v503
    %v522 = vsel %vm510, %v516, %v504
    %v523 = vsel %vm511, %v517, %v505
    %v524 = vsel %vm512, %v518, %v506
    %v525 = vsel %vm513, %v519, %v507
    %v526 = vsel %vm514, %v520, %v508
    %vm527 = vcmp.ge.s32.totalorder %v521, 8
    %vm528 = vcmp.ge.s32.totalorder %v522, 8
    %vm529 = vcmp.ge.s32.totalorder %v523, 8
    %vm530 = vcmp.ge.s32.totalorder %v524, 8
    %vm531 = vcmp.ge.s32.totalorder %v525, 8
    %vm532 = vcmp.ge.s32.totalorder %v526, 8
    %v533 = vsub.s32 %v521, 8
    %v534 = vsub.s32 %v522, 8
    %v535 = vsub.s32 %v523, 8
    %v536 = vsub.s32 %v524, 8
    %v537 = vsub.s32 %v525, 8
    %v538 = vsub.s32 %v526, 8
    %v539 = vsel %vm527, %v533, %v521
    %v540 = vsel %vm528, %v534, %v522
    %v541 = vsel %vm529, %v535, %v523
    %v542 = vsel %vm530, %v536, %v524
    %v543 = vsel %vm531, %v537, %v525
    %v544 = vsel %vm532, %v538, %v526
    %vm545 = vcmp.ge.s32.totalorder %v539, 8
    %vm546 = vcmp.ge.s32.totalorder %v540, 8
    %vm547 = vcmp.ge.s32.totalorder %v541, 8
    %vm548 = vcmp.ge.s32.totalorder %v542, 8
    %vm549 = vcmp.ge.s32.totalorder %v543, 8
    %vm550 = vcmp.ge.s32.totalorder %v544, 8
    %v551 = vsub.s32 %v539, 8
    %v552 = vsub.s32 %v540, 8
    %v553 = vsub.s32 %v541, 8
    %v554 = vsub.s32 %v542, 8
    %v555 = vsub.s32 %v543, 8
    %v556 = vsub.s32 %v544, 8
    %v557 = vsel %vm545, %v551, %v539
    %v558 = vsel %vm546, %v552, %v540
    %v559 = vsel %vm547, %v553, %v541
    %v560 = vsel %vm548, %v554, %v542
    %v561 = vsel %vm549, %v555, %v543
    %v562 = vsel %vm550, %v556, %v544
    %v563 = vsub.s32 %v466, %v557
    %v564 = vsub.s32 %v467, %v558
    %v565 = vsub.s32 %v468, %v559
    %v566 = vsub.s32 %v469, %v560
    %v567 = vsub.s32 %v470, %v561
    %v568 = vsub.s32 %v471, %v562
    %vm569 = vcmp.ge.s32.totalorder %v473, %v563
    %vm570 = vcmp.ge.s32.totalorder %v473, %v564
    %vm571 = vcmp.ge.s32.totalorder %v473, %v565
    %vm572 = vcmp.ge.s32.totalorder %v473, %v566
    %vm573 = vcmp.ge.s32.totalorder %v473, %v567
    %vm574 = vcmp.ge.s32.totalorder %v473, %v568
    %v575 = vadd.s32 %v563, 8
    %v576 = vadd.s32 %v564, 8
    %v577 = vadd.s32 %v565, 8
    %v578 = vadd.s32 %v566, 8
    %v579 = vadd.s32 %v567, 8
    %v580 = vadd.s32 %v568, 8
    %vm581 = vcmp.lt.s32.totalorder %v473, %v575
    %vm582 = vcmp.lt.s32.totalorder %v473, %v576
    %vm583 = vcmp.lt.s32.totalorder %v473, %v577
    %vm584 = vcmp.lt.s32.totalorder %v473, %v578
    %vm585 = vcmp.lt.s32.totalorder %v473, %v579
    %vm586 = vcmp.lt.s32.totalorder %v473, %v580
    %vm587 = vmand %vm569, %vm581
    %vm588 = vmand %vm570, %vm582
    %vm589 = vmand %vm571, %vm583
    %vm590 = vmand %vm572, %vm584
    %vm591 = vmand %vm573, %vm585
    %vm592 = vmand %vm574, %vm586
    %v593 = vsel %vm587, 0.0, -1e+30
    %v594 = vsel %vm588, 0.0, -1e+30
    %v595 = vsel %vm589, 0.0, -1e+30
    %v596 = vsel %vm590, 0.0, -1e+30
    %v597 = vsel %vm591, 0.0, -1e+30
    %v598 = vsel %vm592, 0.0, -1e+30
    %v599 = vadd.f32 %v459, %v593
    %v600 = vadd.f32 %v460, %v594
    %v601 = vadd.f32 %v461, %v595
    %v602 = vadd.f32 %v462, %v596
    %v603 = vadd.f32 %v463, %v597
    %v604 = vadd.f32 %v464, %v598
    %vm605 = vcmask 392192
    %v606 = vsel %vm605, %v599, -inf
    %607 = vmax.xlane.f32.xlu0 %v606
    %v608 = vpop.xlane.xlu0 %607
    %v609 = vsel %vm605, %v600, -inf
    %610 = vmax.xlane.f32.xlu0 %v609
    %v611 = vpop.xlane.xlu0 %610
    %v612 = vsel %vm605, %v601, -inf
    %613 = vmax.xlane.f32.xlu0 %v612
    %v614 = vpop.xlane.xlu0 %613
    %v615 = vsel %vm605, %v602, -inf
    %616 = vmax.xlane.f32.xlu0 %v615
    %v617 = vpop.xlane.xlu0 %616
    %v618 = vsel %vm605, %v603, -inf
    %619 = vmax.xlane.f32.xlu0 %v618
    %v620 = vpop.xlane.xlu0 %619
    %v621 = vsel %vm605, %v604, -inf
    %622 = vmax.xlane.f32.xlu0 %v621
    %v623 = vpop.xlane.xlu0 %622
    %v624 = vsub.f32 %v599, %v608
    %v625 = vsub.f32 %v600, %v611
    %v626 = vsub.f32 %v601, %v614
    %v627 = vsub.f32 %v602, %v617
    %v628 = vsub.f32 %v603, %v620
    %v629 = vsub.f32 %v604, %v623
    %v630 = vmul.f32 %v624, 1.442695
    %v631 = vpow.pop %v630
    %v632 = vmul.f32 %v625, 1.442695
    %v633 = vpow.pop %v632
    %v634 = vmul.f32 %v626, 1.442695
    %v635 = vpow.pop %v634
    %v636 = vmul.f32 %v627, 1.442695
    %v637 = vpow.pop %v636
    %v638 = vmul.f32 %v628, 1.442695
    %v639 = vpow.pop %v638
    %v640 = vmul.f32 %v629, 1.442695
    %v641 = vpow.pop %v640
    %v642 = vsel %vm605, %v631, 0.0
    %643 = vadd.xlane.f32.xlu0 %v642
    %v644 = vpop.xlane.xlu0 %643
    %v645 = vsel %vm605, %v633, 0.0
    %646 = vadd.xlane.f32.xlu0 %v645
    %v647 = vpop.xlane.xlu0 %646
    %v648 = vsel %vm605, %v635, 0.0
    %649 = vadd.xlane.f32.xlu0 %v648
    %v650 = vpop.xlane.xlu0 %649
    %v651 = vsel %vm605, %v637, 0.0
    %652 = vadd.xlane.f32.xlu0 %v651
    %v653 = vpop.xlane.xlu0 %652
    %v654 = vsel %vm605, %v639, 0.0
    %655 = vadd.xlane.f32.xlu0 %v654
    %v656 = vpop.xlane.xlu0 %655
    %v657 = vsel %vm605, %v641, 0.0
    %658 = vadd.xlane.f32.xlu0 %v657
    %v659 = vpop.xlane.xlu0 %658
    %v660 = vrcp.pop %v644
    %v661 = vrcp.pop %v647
    %v662 = vrcp.pop %v650
    %v663 = vrcp.pop %v653
    %v664 = vrcp.pop %v656
    %v665 = vrcp.pop %v659
    %v666 = vmul.f32 %v631, %v660
    %v667 = vmul.f32 %v633, %v661
    %v668 = vmul.f32 %v635, %v662
    %v669 = vmul.f32 %v637, %v663
    %v670 = vmul.f32 %v639, %v664
    %v671 = vmul.f32 %v641, %v665
    %v672 = vpack.c.bf16 %v667, %v666
    %v673 = vpack.c.bf16 %v669, %v668
    %v674 = vpack.c.bf16 %v671, %v670
    %v675 = vpack.c.bf16 %v369, %v367
    %v676 = vpack.c.bf16 %v393, %v391
    %v677 = vpack.c.bf16 %v417, %v415
    %v678 = vpack.c.bf16 %v374, %v372
    %v679 = vpack.c.bf16 %v398, %v396
    %v680 = vpack.c.bf16 %v422, %v420
    %v681 = vpack.c.bf16 %v379, %v377
    %v682 = vpack.c.bf16 %v403, %v401
    %v683 = vpack.c.bf16 %v427, %v425
    %v685 = vsel %vm605, %v672, 0
    %v688 = vsel %vm605, %v673, 0
    %v691 = vsel %vm605, %v674, 0
    %693 = vmatpush.bf16.msra.mxu0 0
    %694 = vmatpush.bf16.msra.mxu0 0
    %695 = vmatpush.bf16.msra.mxu0 0
    %696 = vmatpush.bf16.msra.mxu0 0
    %697 = vmatpush.bf16.msra.mxu0 0
    %698 = vmatpush.bf16.msra.mxu0 %v681
    %699 = vmatpush.bf16.msra.mxu0 %v678
    %700 = vmatpush.bf16.msra.mxu0 %v675
    %701 = vmatmul.bf16.gmra.mxu0 %v685
    %v702 = vpop.f32.mrf.mxu0
    %v703 = vadd.f32 0.0, %v702
    %v704 = vpop.f32.mrf.mxu0
    %v705 = vadd.f32 0.0, %v704
    %706 = vmatmul.bf16.gmra.mxu0 %v688
    %v707 = vpop.f32.mrf.mxu0
    %v708 = vadd.f32 0.0, %v707
    %v709 = vpop.f32.mrf.mxu0
    %v710 = vadd.f32 0.0, %v709
    %711 = vmatmul.bf16.gmra.mxu0 %v691
    %v712 = vpop.f32.mrf.mxu0
    %v713 = vadd.f32 0.0, %v712
    %v714 = vpop.f32.mrf.mxu0
    %v715 = vadd.f32 0.0, %v714
    %716 = vdwg.mxu0
    %717 = vmatpush.bf16.msra.mxu0 0
    %718 = vmatpush.bf16.msra.mxu0 0
    %719 = vmatpush.bf16.msra.mxu0 0
    %720 = vmatpush.bf16.msra.mxu0 0
    %721 = vmatpush.bf16.msra.mxu0 0
    %722 = vmatpush.bf16.msra.mxu0 %v682
    %723 = vmatpush.bf16.msra.mxu0 %v679
    %724 = vmatpush.bf16.msra.mxu0 %v676
    %725 = vmatmul.bf16.gmra.mxu0 %v685
    %v726 = vpop.f32.mrf.mxu0
    %v727 = vadd.f32 0.0, %v726
    %v728 = vpop.f32.mrf.mxu0
    %v729 = vadd.f32 0.0, %v728
    %730 = vmatmul.bf16.gmra.mxu0 %v688
    %v731 = vpop.f32.mrf.mxu0
    %v732 = vadd.f32 0.0, %v731
    %v733 = vpop.f32.mrf.mxu0
    %v734 = vadd.f32 0.0, %v733
    %735 = vmatmul.bf16.gmra.mxu0 %v691
    %v736 = vpop.f32.mrf.mxu0
    %v737 = vadd.f32 0.0, %v736
    %v738 = vpop.f32.mrf.mxu0
    %v739 = vadd.f32 0.0, %v738
    %740 = vdwg.mxu0
    %741 = vmatpush.bf16.msra.mxu0 0
    %742 = vmatpush.bf16.msra.mxu0 0
    %743 = vmatpush.bf16.msra.mxu0 0
    %744 = vmatpush.bf16.msra.mxu0 0
    %745 = vmatpush.bf16.msra.mxu0 0
    %746 = vmatpush.bf16.msra.mxu0 %v683
    %747 = vmatpush.bf16.msra.mxu0 %v680
    %748 = vmatpush.bf16.msra.mxu0 %v677
    %749 = vmatmul.bf16.gmra.mxu0 %v685
    %v750 = vpop.f32.mrf.mxu0
    %v751 = vadd.f32 0.0, %v750
    %v752 = vpop.f32.mrf.mxu0
    %v753 = vadd.f32 0.0, %v752
    %754 = vmatmul.bf16.gmra.mxu0 %v688
    %v755 = vpop.f32.mrf.mxu0
    %v756 = vadd.f32 0.0, %v755
    %v757 = vpop.f32.mrf.mxu0
    %v758 = vadd.f32 0.0, %v757
    %759 = vmatmul.bf16.gmra.mxu0 %v691
    %v760 = vpop.f32.mrf.mxu0
    %v761 = vadd.f32 0.0, %v760
    %v762 = vpop.f32.mrf.mxu0
    %v763 = vadd.f32 0.0, %v762
    %764 = vdwg.mxu0
    %vm765 = vcmp.ge.s32.totalorder %v466, 24
    %vm766 = vcmp.ge.s32.totalorder %v467, 24
    %vm767 = vcmp.ge.s32.totalorder %v468, 24
    %vm768 = vcmp.ge.s32.totalorder %v469, 24
    %vm769 = vcmp.ge.s32.totalorder %v470, 24
    %vm770 = vcmp.ge.s32.totalorder %v471, 24
    %v771 = vsub.s32 %v466, 24
    %v772 = vsub.s32 %v467, 24
    %v773 = vsub.s32 %v468, 24
    %v774 = vsub.s32 %v470, 24
    %v775 = vsub.s32 %v471, 24
    %v776 = vsel %vm765, %v771, %v466
    %v777 = vsel %vm766, %v772, %v467
    %v778 = vsel %vm767, %v773, %v468
    %v779 = vsel %vm768, %v466, %v469
    %v780 = vsel %vm769, %v774, %v470
    %v781 = vsel %vm770, %v775, %v471
    %v782 = vadd.s32 %v473, 128
    %v783 = vadd.s32 %v473, 256
    %v784 = vmul.u32 %v776, 16
    %v785 = vmul.u32 %v777, 16
    %v786 = vmul.u32 %v778, 16
    %v787 = vmul.u32 %v779, 16
    %v788 = vmul.u32 %v780, 16
    %v789 = vmul.u32 %v781, 16
    %vm790 = vcmp.ge.s32.totalorder %v473, %v784
    %vm791 = vcmp.ge.s32.totalorder %v782, %v784
    %vm792 = vcmp.ge.s32.totalorder %v783, %v784
    %vm793 = vcmp.ge.s32.totalorder %v473, %v785
    %vm794 = vcmp.ge.s32.totalorder %v782, %v785
    %vm795 = vcmp.ge.s32.totalorder %v783, %v785
    %vm796 = vcmp.ge.s32.totalorder %v473, %v786
    %vm797 = vcmp.ge.s32.totalorder %v782, %v786
    %vm798 = vcmp.ge.s32.totalorder %v783, %v786
    %vm799 = vcmp.ge.s32.totalorder %v473, %v787
    %vm800 = vcmp.ge.s32.totalorder %v782, %v787
    %vm801 = vcmp.ge.s32.totalorder %v783, %v787
    %vm802 = vcmp.ge.s32.totalorder %v473, %v788
    %vm803 = vcmp.ge.s32.totalorder %v782, %v788
    %vm804 = vcmp.ge.s32.totalorder %v783, %v788
    %vm805 = vcmp.ge.s32.totalorder %v473, %v789
    %vm806 = vcmp.ge.s32.totalorder %v782, %v789
    %vm807 = vcmp.ge.s32.totalorder %v783, %v789
    %v808 = vadd.s32 %v784, 16
    %v809 = vadd.s32 %v785, 16
    %v810 = vadd.s32 %v786, 16
    %v811 = vadd.s32 %v787, 16
    %v812 = vadd.s32 %v788, 16
    %v813 = vadd.s32 %v789, 16
    %vm814 = vcmp.lt.s32.totalorder %v473, %v808
    %vm815 = vcmp.lt.s32.totalorder %v782, %v808
    %vm816 = vcmp.lt.s32.totalorder %v783, %v808
    %vm817 = vcmp.lt.s32.totalorder %v473, %v809
    %vm818 = vcmp.lt.s32.totalorder %v782, %v809
    %vm819 = vcmp.lt.s32.totalorder %v783, %v809
    %vm820 = vcmp.lt.s32.totalorder %v473, %v810
    %vm821 = vcmp.lt.s32.totalorder %v782, %v810
    %vm822 = vcmp.lt.s32.totalorder %v783, %v810
    %vm823 = vcmp.lt.s32.totalorder %v473, %v811
    %vm824 = vcmp.lt.s32.totalorder %v782, %v811
    %vm825 = vcmp.lt.s32.totalorder %v783, %v811
    %vm826 = vcmp.lt.s32.totalorder %v473, %v812
    %vm827 = vcmp.lt.s32.totalorder %v782, %v812
    %vm828 = vcmp.lt.s32.totalorder %v783, %v812
    %vm829 = vcmp.lt.s32.totalorder %v473, %v813
    %vm830 = vcmp.lt.s32.totalorder %v782, %v813
    %vm831 = vcmp.lt.s32.totalorder %v783, %v813
    %vm832 = vmand %vm790, %vm814
    %vm833 = vmand %vm791, %vm815
    %vm834 = vmand %vm792, %vm816
    %vm835 = vmand %vm793, %vm817
    %vm836 = vmand %vm794, %vm818
    %vm837 = vmand %vm795, %vm819
    %vm838 = vmand %vm796, %vm820
    %vm839 = vmand %vm797, %vm821
    %vm840 = vmand %vm798, %vm822
    %vm841 = vmand %vm799, %vm823
    %vm842 = vmand %vm800, %vm824
    %vm843 = vmand %vm801, %vm825
    %vm844 = vmand %vm802, %vm826
    %vm845 = vmand %vm803, %vm827
    %vm846 = vmand %vm804, %vm828
    %vm847 = vmand %vm805, %vm829
    %vm848 = vmand %vm806, %vm830
    %vm849 = vmand %vm807, %vm831
    %v850 = vsel %vm832, %v703, 0.0
    %v851 = vsel %vm833, %v727, 0.0
    %v852 = vsel %vm834, %v751, 0.0
    %v853 = vsel %vm835, %v705, 0.0
    %v854 = vsel %vm836, %v729, 0.0
    %v855 = vsel %vm837, %v753, 0.0
    %v856 = vsel %vm838, %v708, 0.0
    %v857 = vsel %vm839, %v732, 0.0
    %v858 = vsel %vm840, %v756, 0.0
    %v859 = vsel %vm841, %v710, 0.0
    %v860 = vsel %vm842, %v734, 0.0
    %v861 = vsel %vm843, %v758, 0.0
    %v862 = vsel %vm844, %v713, 0.0
    %v863 = vsel %vm845, %v737, 0.0
    %v864 = vsel %vm846, %v761, 0.0
    %v865 = vsel %vm847, %v715, 0.0
    %v866 = vsel %vm848, %v739, 0.0
    %v867 = vsel %vm849, %v763, 0.0
    %v868 = vmul.u32 %v466, 24
    %vm869 = vcmp.ge.s32.totalorder %v473, %v868
    %v870 = vadd.s32 %v868, 24
    %vm871 = vcmp.lt.s32.totalorder %v473, %v870
    %vm872 = vmand %vm869, %vm871
    %v873 = vsel %vm872, 1, 0
    %v874 = vcvt.s32.f32 %v873
    %v875 = vpack.c.bf16 %v874, %v874
    %v876 = vpack.c.bf16 %v853, %v850
    %v877 = vpack.c.bf16 %v854, %v851
    %v878 = vpack.c.bf16 %v855, %v852
    %v879 = vpack.c.bf16 %v859, %v856
    %v880 = vpack.c.bf16 %v860, %v857
    %v881 = vpack.c.bf16 %v861, %v858
    %v882 = vpack.c.bf16 %v865, %v862
    %v883 = vpack.c.bf16 %v866, %v863
    %v884 = vpack.c.bf16 %v867, %v864
    %v886 = vsel %vm605, %v875, 0
    %888 = vmatpush.bf16.msra.mxu0 0
    %889 = vmatpush.bf16.msra.mxu0 0
    %890 = vmatpush.bf16.msra.mxu0 0
    %891 = vmatpush.bf16.msra.mxu0 0
    %892 = vmatpush.bf16.msra.mxu0 0
    %893 = vmatpush.bf16.msra.mxu0 %v882
    %894 = vmatpush.bf16.msra.mxu0 %v879
    %895 = vmatpush.bf16.msra.mxu0 %v876
    %896 = vmatmul.bf16.gmra.mxu0 %v886
    %v897 = vpop.f32.mrf.mxu0
    %v898 = vadd.f32 0.0, %v897
    %v899 = vpop.f32.mrf.mxu0
    %900 = vdwg.mxu0
    %901 = vmatpush.bf16.msra.mxu0 0
    %902 = vmatpush.bf16.msra.mxu0 0
    %903 = vmatpush.bf16.msra.mxu0 0
    %904 = vmatpush.bf16.msra.mxu0 0
    %905 = vmatpush.bf16.msra.mxu0 0
    %906 = vmatpush.bf16.msra.mxu0 %v883
    %907 = vmatpush.bf16.msra.mxu0 %v880
    %908 = vmatpush.bf16.msra.mxu0 %v877
    %909 = vmatmul.bf16.gmra.mxu0 %v886
    %v910 = vpop.f32.mrf.mxu0
    %v911 = vadd.f32 0.0, %v910
    %v912 = vpop.f32.mrf.mxu0
    %913 = vdwg.mxu0
    %914 = vmatpush.bf16.msra.mxu0 0
    %915 = vmatpush.bf16.msra.mxu0 0
    %916 = vmatpush.bf16.msra.mxu0 0
    %917 = vmatpush.bf16.msra.mxu0 0
    %918 = vmatpush.bf16.msra.mxu0 0
    %919 = vmatpush.bf16.msra.mxu0 %v884
    %920 = vmatpush.bf16.msra.mxu0 %v881
    %921 = vmatpush.bf16.msra.mxu0 %v878
    %922 = vmatmul.bf16.gmra.mxu0 %v886
    %v923 = vpop.f32.mrf.mxu0
    %v924 = vadd.f32 0.0, %v923
    %v925 = vpop.f32.mrf.mxu0
    %926 = vdwg.mxu0
    %v927 = vpack.c.bf16 %v898, %v898
    %v928 = vpack.c.bf16 %v911, %v911
    %v929 = vpack.c.bf16 %v924, %v924
    %v930 = vld [vmem:[%s2] sm:$0xf]
    %v931 = vld [vmem:[%s2 + $0x4] sm:$0xf]
    %v932 = vld [vmem:[%s2 + $0x8] sm:$0xf]
    %v933 = vld [vmem:[%s2 + $0xc] sm:$0xf]
    %v934 = vld [vmem:[%s2 + $0x10] sm:$0xf]
    %v935 = vld [vmem:[%s2 + $0x14] sm:$0xf]
    %v936 = vld [vmem:[%s2 + $0x18] sm:$0xf]
    %v937 = vld [vmem:[%s2 + $0x1c] sm:$0xf]
    %v938 = vld [vmem:[%s2 + $0x20] sm:$0xf]
    %v939 = vld [vmem:[%s2 + $0x24] sm:$0xf]
    %v940 = vld [vmem:[%s2 + $0x28] sm:$0xf]
    %v941 = vld [vmem:[%s2 + $0x2c] sm:$0xf]
    %v942 = vld [vmem:[%s2 + $0x30] sm:$0xf]
    %v943 = vld [vmem:[%s2 + $0x34] sm:$0xf]
    %v944 = vld [vmem:[%s2 + $0x38] sm:$0xf]
    %v945 = vld [vmem:[%s2 + $0x3c] sm:$0xf]
    %v946 = vld [vmem:[%s2 + $0x40] sm:$0xf]
    %v947 = vld [vmem:[%s2 + $0x44] sm:$0xf]
    %v948 = vld [vmem:[%s2 + $0x48] sm:$0xf]
    %v949 = vld [vmem:[%s2 + $0x4c] sm:$0xf]
    %v950 = vld [vmem:[%s2 + $0x50] sm:$0xf]
    %v951 = vld [vmem:[%s2 + $0x54] sm:$0xf]
    %v952 = vld [vmem:[%s2 + $0x58] sm:$0xf]
    %v953 = vld [vmem:[%s2 + $0x5c] sm:$0xf]
    %v954 = vld [vmem:[%s2 + $0x60] sm:$0xf]
    %v955 = vld [vmem:[%s2 + $0x64] sm:$0xf]
    %v956 = vld [vmem:[%s2 + $0x68] sm:$0xf]
    %v957 = vld [vmem:[%s2 + $0x6c] sm:$0xf]
    %v958 = vld [vmem:[%s2 + $0x70] sm:$0xf]
    %v959 = vld [vmem:[%s2 + $0x74] sm:$0xf]
    %v960 = vld [vmem:[%s2 + $0x78] sm:$0xf]
    %v961 = vld [vmem:[%s2 + $0x7c] sm:$0xf]
    %v962 = vld [vmem:[%s2 + $0x80] sm:$0xf]
    %v963 = vld [vmem:[%s2 + $0x84] sm:$0xf]
    %v964 = vld [vmem:[%s2 + $0x88] sm:$0xf]
    %v965 = vld [vmem:[%s2 + $0x8c] sm:$0xf]
    %v966 = vld [vmem:[%s2 + $0x90] sm:$0xf]
    %v967 = vld [vmem:[%s2 + $0x94] sm:$0xf]
    %v968 = vld [vmem:[%s2 + $0x98] sm:$0xf]
    %v969 = vld [vmem:[%s2 + $0x9c] sm:$0xf]
    %v970 = vld [vmem:[%s2 + $0xa0] sm:$0xf]
    %v971 = vld [vmem:[%s2 + $0xa4] sm:$0xf]
    %v972 = vld [vmem:[%s2 + $0xa8] sm:$0xf]
    %v973 = vld [vmem:[%s2 + $0xac] sm:$0xf]
    %v974 = vld [vmem:[%s2 + $0xb0] sm:$0xf]
    %v975 = vld [vmem:[%s2 + $0xb4] sm:$0xf]
    %v976 = vld [vmem:[%s2 + $0xb8] sm:$0xf]
    %v977 = vld [vmem:[%s2 + $0xbc] sm:$0xf]
    %v978 = vld [vmem:[%s4] sm:$0x1]
    %v979 = vperm.slane %v978, 0
    %v1028 = vunpack.c.l.b16 %v930
    %v1029 = vunpack.c.l.b16 %v931
    %v1030 = vunpack.c.l.b16 %v932
    %v1031 = vunpack.c.l.b16 %v933
    %v1032 = vunpack.c.l.b16 %v934
    %v1033 = vunpack.c.l.b16 %v935
    %v1034 = vunpack.c.l.b16 %v936
    %v1035 = vunpack.c.l.b16 %v937
    %v1036 = vunpack.c.l.b16 %v938
    %v1037 = vunpack.c.l.b16 %v939
    %v1038 = vunpack.c.l.b16 %v940
    %v1039 = vunpack.c.l.b16 %v941
    %v1040 = vunpack.c.l.b16 %v942
    %v1041 = vunpack.c.l.b16 %v943
    %v1042 = vunpack.c.l.b16 %v944
    %v1043 = vunpack.c.l.b16 %v945
    %v1044 = vunpack.c.l.b16 %v946
    %v1045 = vunpack.c.l.b16 %v947
    %v1046 = vunpack.c.l.b16 %v948
    %v1047 = vunpack.c.l.b16 %v949
    %v1048 = vunpack.c.l.b16 %v950
    %v1049 = vunpack.c.l.b16 %v951
    %v1050 = vunpack.c.l.b16 %v952
    %v1051 = vunpack.c.l.b16 %v953
    %v1052 = vunpack.c.l.b16 %v954
    %v1053 = vunpack.c.l.b16 %v955
    %v1054 = vunpack.c.l.b16 %v956
    %v1055 = vunpack.c.l.b16 %v957
    %v1056 = vunpack.c.l.b16 %v958
    %v1057 = vunpack.c.l.b16 %v959
    %v1058 = vunpack.c.l.b16 %v960
    %v1059 = vunpack.c.l.b16 %v961
    %v1060 = vunpack.c.l.b16 %v962
    %v1061 = vunpack.c.l.b16 %v963
    %v1062 = vunpack.c.l.b16 %v964
    %v1063 = vunpack.c.l.b16 %v965
    %v1064 = vunpack.c.l.b16 %v966
    %v1065 = vunpack.c.l.b16 %v967
    %v1066 = vunpack.c.l.b16 %v968
    %v1067 = vunpack.c.l.b16 %v969
    %v1068 = vunpack.c.l.b16 %v970
    %v1069 = vunpack.c.l.b16 %v971
    %v1070 = vunpack.c.l.b16 %v972
    %v1071 = vunpack.c.l.b16 %v973
    %v1072 = vunpack.c.l.b16 %v974
    %v1073 = vunpack.c.l.b16 %v975
    %v1074 = vunpack.c.l.b16 %v976
    %v1075 = vunpack.c.l.b16 %v977
    %v1076 = vpack.c.b16 %v1029, %v1028
    %v1077 = vpack.c.b16 %v1031, %v1030
    %v1078 = vpack.c.b16 %v1033, %v1032
    %v1079 = vpack.c.b16 %v1035, %v1034
    %v1080 = vpack.c.b16 %v1037, %v1036
    %v1081 = vpack.c.b16 %v1039, %v1038
    %v1082 = vpack.c.b16 %v1041, %v1040
    %v1083 = vpack.c.b16 %v1043, %v1042
    %v1084 = vpack.c.b16 %v1045, %v1044
    %v1085 = vpack.c.b16 %v1047, %v1046
    %v1086 = vpack.c.b16 %v1049, %v1048
    %v1087 = vpack.c.b16 %v1051, %v1050
    %v1088 = vpack.c.b16 %v1053, %v1052
    %v1089 = vpack.c.b16 %v1055, %v1054
    %v1090 = vpack.c.b16 %v1057, %v1056
    %v1091 = vpack.c.b16 %v1059, %v1058
    %v1092 = vpack.c.b16 %v1061, %v1060
    %v1093 = vpack.c.b16 %v1063, %v1062
    %v1094 = vpack.c.b16 %v1065, %v1064
    %v1095 = vpack.c.b16 %v1067, %v1066
    %v1096 = vpack.c.b16 %v1069, %v1068
    %v1097 = vpack.c.b16 %v1071, %v1070
    %v1098 = vpack.c.b16 %v1073, %v1072
    %v1099 = vpack.c.b16 %v1075, %v1074
    %1124 = vmatpush.bf16.msra.mxu0 %v1083
    %1125 = vmatpush.bf16.msra.mxu0 %v1082
    %1126 = vmatpush.bf16.msra.mxu0 %v1081
    %1127 = vmatpush.bf16.msra.mxu0 %v1080
    %1128 = vmatpush.bf16.msra.mxu0 %v1079
    %1129 = vmatpush.bf16.msra.mxu0 %v1078
    %1130 = vmatpush.bf16.msra.mxu0 %v1077
    %1131 = vmatpush.bf16.msra.mxu0 %v1076
    %1132 = vmatmul.bf16.gmra.mxu0 %v927
    %v1133 = vpop.f32.mrf.mxu0
    %v1134 = vadd.f32 %v979, %v1133
    %v1135 = vpop.f32.mrf.mxu0
    %1136 = vdwg.mxu0
    %1137 = vmatpush.bf16.msra.mxu0 %v1091
    %1138 = vmatpush.bf16.msra.mxu0 %v1090
    %1139 = vmatpush.bf16.msra.mxu0 %v1089
    %1140 = vmatpush.bf16.msra.mxu0 %v1088
    %1141 = vmatpush.bf16.msra.mxu0 %v1087
    %1142 = vmatpush.bf16.msra.mxu0 %v1086
    %1143 = vmatpush.bf16.msra.mxu0 %v1085
    %1144 = vmatpush.bf16.msra.mxu0 %v1084
    %1145 = vmatmul.bf16.gmra.mxu0 %v928
    %v1146 = vpop.f32.mrf.mxu0
    %v1147 = vadd.f32 %v1134, %v1146
    %v1148 = vpop.f32.mrf.mxu0
    %1149 = vdwg.mxu0
    %1150 = vmatpush.bf16.msra.mxu0 %v1099
    %1151 = vmatpush.bf16.msra.mxu0 %v1098
    %1152 = vmatpush.bf16.msra.mxu0 %v1097
    %1153 = vmatpush.bf16.msra.mxu0 %v1096
    %1154 = vmatpush.bf16.msra.mxu0 %v1095
    %1155 = vmatpush.bf16.msra.mxu0 %v1094
    %1156 = vmatpush.bf16.msra.mxu0 %v1093
    %1157 = vmatpush.bf16.msra.mxu0 %v1092
    %1158 = vmatmul.bf16.gmra.mxu0 %v929
    %v1159 = vpop.f32.mrf.mxu0
    %v1160 = vadd.f32 %v1147, %v1159
    %v1161 = vpop.f32.mrf.mxu0
    %1162 = vdwg.mxu0
    %v1163 = vmax.f32 %v1160, 0.0
    %v1164 = vpack.c.bf16 %v1163, %v1163
    %v1165 = vld [vmem:[%s3] sm:$0xf]
    %v1166 = vld [vmem:[%s3 + $0x4] sm:$0xf]
    %v1167 = vld [vmem:[%s3 + $0x8] sm:$0xf]
    %v1168 = vld [vmem:[%s3 + $0xc] sm:$0xf]
    %v1169 = vld [vmem:[%s3 + $0x10] sm:$0xf]
    %v1170 = vld [vmem:[%s3 + $0x14] sm:$0xf]
    %v1171 = vld [vmem:[%s3 + $0x18] sm:$0xf]
    %v1172 = vld [vmem:[%s3 + $0x1c] sm:$0xf]
    %v1173 = vld [vmem:[%s4 + $0x1] sm:$0x1]
    %v1174 = vperm.slane %v1173, 0
    %v1183 = vunpack.c.l.b16 %v1165
    %v1184 = vunpack.c.l.b16 %v1166
    %v1185 = vunpack.c.l.b16 %v1167
    %v1186 = vunpack.c.l.b16 %v1168
    %v1187 = vunpack.c.l.b16 %v1169
    %v1188 = vunpack.c.l.b16 %v1170
    %v1189 = vunpack.c.l.b16 %v1171
    %v1190 = vunpack.c.l.b16 %v1172
    %v1191 = vpack.c.b16 %v1184, %v1183
    %v1192 = vpack.c.b16 %v1186, %v1185
    %v1193 = vpack.c.b16 %v1188, %v1187
    %v1194 = vpack.c.b16 %v1190, %v1189
    %vm1199 = vcmask 523264
    %v1201 = vsel %vm1199, %v1164, 0
    %1203 = vmatpush.bf16.msra.mxu0 0
    %1204 = vmatpush.bf16.msra.mxu0 0
    %1205 = vmatpush.bf16.msra.mxu0 0
    %1206 = vmatpush.bf16.msra.mxu0 0
    %1207 = vmatpush.bf16.msra.mxu0 %v1194
    %1208 = vmatpush.bf16.msra.mxu0 %v1193
    %1209 = vmatpush.bf16.msra.mxu0 %v1192
    %1210 = vmatpush.bf16.msra.mxu0 %v1191
    %1211 = vmatmul.bf16.gmra.mxu0 %v1201
    %v1212 = vpop.f32.mrf.mxu0
    %v1213 = vadd.f32 %v1174, %v1212
    %v1214 = vpop.f32.mrf.mxu0
    %1215 = vdwg.mxu0
    %v1216 = vmax.f32 %v1213, 0.0
    %v1217 = vpack.c.bf16 %v1216, %v1216
    %s1218 = scalar_lea.vmem %s3, 32
    %v1219 = vld [vmem:[%s1218] sm:$0xf]
    %v1220 = vld [vmem:[%s1218 + $0x4] sm:$0xf]
    %v1221 = vld [vmem:[%s1218 + $0x8] sm:$0xf]
    %v1222 = vld [vmem:[%s1218 + $0xc] sm:$0xf]
    %v1223 = vld [vmem:[%s1218 + $0x10] sm:$0xf]
    %v1224 = vld [vmem:[%s1218 + $0x14] sm:$0xf]
    %v1225 = vld [vmem:[%s1218 + $0x18] sm:$0xf]
    %v1226 = vld [vmem:[%s1218 + $0x1c] sm:$0xf]
    %v1227 = vld [vmem:[%s4 + $0x2] sm:$0x1]
    %v1228 = vperm.slane %v1227, 0
    %v1237 = vunpack.c.l.b16 %v1219
    %v1238 = vunpack.c.l.b16 %v1220
    %v1239 = vunpack.c.l.b16 %v1221
    %v1240 = vunpack.c.l.b16 %v1222
    %v1241 = vunpack.c.l.b16 %v1223
    %v1242 = vunpack.c.l.b16 %v1224
    %v1243 = vunpack.c.l.b16 %v1225
    %v1244 = vunpack.c.l.b16 %v1226
    %v1245 = vpack.c.b16 %v1238, %v1237
    %v1246 = vpack.c.b16 %v1240, %v1239
    %v1247 = vpack.c.b16 %v1242, %v1241
    %v1248 = vpack.c.b16 %v1244, %v1243
    %v1254 = vsel %vm1199, %v1217, 0
    %1256 = vmatpush.bf16.msra.mxu0 0
    %1257 = vmatpush.bf16.msra.mxu0 0
    %1258 = vmatpush.bf16.msra.mxu0 0
    %1259 = vmatpush.bf16.msra.mxu0 0
    %1260 = vmatpush.bf16.msra.mxu0 %v1248
    %1261 = vmatpush.bf16.msra.mxu0 %v1247
    %1262 = vmatpush.bf16.msra.mxu0 %v1246
    %1263 = vmatpush.bf16.msra.mxu0 %v1245
    %1264 = vmatmul.bf16.gmra.mxu0 %v1254
    %v1265 = vpop.f32.mrf.mxu0
    %v1266 = vadd.f32 %v1228, %v1265
    %v1267 = vpop.f32.mrf.mxu0
    %1268 = vdwg.mxu0
    %vm1269 = vcmask 328704
    %1270 = vst.msk [vmem:[#allocation2] sm:$0x3] %vm1269, %v1266
    // Predicated region
    $region22: #{classifier_forward.1} parent=1 // pred_check
      _
    $region23: #{classifier_forward.1} parent=1 // pred_check_branch
      %1272 = sbr.rel (0) target = $region25
    $region24: #{classifier_forward.1} parent=1 // pred_region
      %1274 = vsyncadd [#allocation3], 0
      %s1276 = sshll.u32 [#allocation2], 4
      %s1277 = int_to_ptr.vmem [resolvable:$true] %s1276
      %s1278 = sshll.u32 %s5, 4
      %s1279 = int_to_ptr.hbm [resolvable:$true] %s1278
      %1281 = dma.vmem_to_hbm [thread:$0]  %s1277, 32, %s1279, [#allocation3]
    $region25: #{classifier_forward.1} parent=1 // pred_fallthru
      _
    // Predicated region
    $region26: #{classifier_forward.1} parent=1 // pred_check
      _
    $region27: #{classifier_forward.1} parent=1 // pred_check_branch
      %1283 = sbr.rel (0) target = $region29
    $region28: #{classifier_forward.1} parent=1 // pred_region
      %1285 = dma.done [#allocation3], 32
    $region29: #{classifier_forward.1} parent=1 // pred_fallthru
      _
    %1286 = vsyncpa [#allocation3], 1

</llo_original>
